<compile_context>
chip_gen: v7x
topology: tpu7x:2x2x1
jax: 0.10.0
libtpu: 0.0.40
codegen_flags: <defaults>
</compile_context>

<pallas_src>
import jax
import jax.numpy as jnp
from jax import lax
from jax.experimental import pallas as pl
from jax.experimental.pallas import tpu as pltpu


# ------------------------------ Pallas kernel --------------------------------

def _full_spec(shape):
    # Single grid point, whole array resident in VMEM.
    return pl.BlockSpec(shape, lambda *_: (0,) * len(shape))


def make_fused_kernel(n_layers, S, Bp, H):
    """Fused forward kernel for fixed (n_layers, S, padded batch Bp, hidden H)."""
    LH = n_layers * H
    n_steps = S + n_layers - 1          # wavefront length

    def kernel(ids_ref, emb_ref, wblk_ref, brest_ref, fcw_ref, fcb_ref, out_ref):
        n = S * Bp
        v_pad = emb_ref.shape[0]

        # ---- Embedding gather fused with layer-0 input projection (+ b0) ----
        # one-hot @ (embedding @ W_ih0 + b0): a single MXU matmul.
        ids = ids_ref[...]                                      # [S*Bp, 1] int32, time-major
        iota = lax.broadcasted_iota(jnp.int32, (n, v_pad), 1)
        onehot = jnp.where(ids == iota, 1.0, 0.0)               # [S*Bp, v_pad] f32
        xw0 = jnp.dot(onehot, emb_ref[...],
                      preferred_element_type=jnp.float32)       # [S*Bp, H], b0 included

        wblk = wblk_ref[...]                                    # [LH, LH] block recurrence matrix
        brest = brest_ref[...]                                  # [max(L-1,1), H]

        # Hoisted bias broadcasts (JAX doesn't CSE broadcast_in_dim).
        zeros_blk = jnp.zeros((Bp, H), jnp.float32)
        b_bcast = [jnp.broadcast_to(brest[l - 1:l, :], (Bp, H))
                   for l in range(1, n_layers)]

        # ---- Per-step additive slabs (independent of the carry, off the chain).
        # Out-of-range slots get an all-zero contribution so warm-up states stay
        # exactly zero (preserves the zero initial hidden state per layer).
        slabs = []
        for k in range(n_steps):
            pieces = [xw0[k * Bp:(k + 1) * Bp, :] if k < S else zeros_blk]
            for l in range(1, n_layers):
                pieces.append(b_bcast[l - 1] if k >= l else zeros_blk)
            slabs.append(pieces[0] if n_layers == 1
                         else jnp.concatenate(pieces, axis=-1))  # [Bp, LH]

        # ---- Layer-wavefront recurrence: ONE matmul + ONE tanh per step ----
        # carry = [h0[t], h1[t-1], ..., h_{L-1}[t-L+1]]
        c = jnp.zeros((Bp, LH), jnp.float32)
        outs = [None] * S
        for k in range(n_steps):
            c = jnp.tanh(slabs[k]
                         + jnp.dot(c, wblk, preferred_element_type=jnp.float32))
            t_last = k - (n_layers - 1)
            if 0 <= t_last < S:
                outs[t_last] = c[:, (n_layers - 1) * H:]        # last-layer block

        # ---- Final Linear on all timesteps at once ----
        h_all = jnp.concatenate(outs, axis=0)                   # [S*Bp, H] time-major
        y = jnp.dot(h_all, fcw_ref[...],
                    preferred_element_type=jnp.float32) + fcb_ref[...]
        out_ref[...] = y.astype(out_ref.dtype)                  # single store

    return kernel


# --------------------------------- wrapper ------------------------------------

def simple_rnn_forward(src, params):
    """src: [B, S] int32 tokens -> predictions [B, S, output_dim]."""
    B, S = src.shape
    V, _E = params["embedding"].shape
    H = params["rnn_layers"][0]["w_hh"].shape[0]
    O = params["fc_w"].shape[1]
    n_layers = len(params["rnn_layers"])
    LH = n_layers * H

    # Pad batch to the 8-sublane boundary; padded rows are discarded at the end.
    Bp = ((B + 7) // 8) * 8
    src_p = src if Bp == B else jnp.pad(src, ((0, Bp - B), (0, 0)))

    # Fold embedding + layer-0 input projection (+ b0) into one table (tiny, XLA).
    emb_proj = (params["embedding"] @ params["rnn_layers"][0]["w_ih"]
                + params["rnn_layers"][0]["b"])                  # [V, H]
    v_pad = ((V + 7) // 8) * 8
    if v_pad != V:
        emb_proj = jnp.pad(emb_proj, ((0, v_pad - V), (0, 0)))

    # Block recurrence matrix: diagonal blocks = W_hh_l, superdiagonal = W_ih_{l+1}.
    w_block = jnp.zeros((LH, LH), jnp.float32)
    for l in range(n_layers):
        w_block = w_block.at[l * H:(l + 1) * H, l * H:(l + 1) * H].set(
            params["rnn_layers"][l]["w_hh"])
        if l + 1 < n_layers:
            w_block = w_block.at[l * H:(l + 1) * H, (l + 1) * H:(l + 2) * H].set(
                params["rnn_layers"][l + 1]["w_ih"])

    # Biases of layers 1..L-1 (layer 0's bias is folded into emb_proj).
    if n_layers > 1:
        b_rest = jnp.concatenate(
            [params["rnn_layers"][l]["b"] for l in range(1, n_layers)], axis=0)
    else:
        b_rest = jnp.zeros((1, H), jnp.float32)

    # Time-major flattened ids: row index = t*Bp + b.
    ids = jnp.transpose(src_p, (1, 0)).reshape(S * Bp, 1).astype(jnp.int32)

    inputs = [ids, emb_proj, w_block, b_rest, params["fc_w"], params["fc_b"]]

    out = pl.pallas_call(
        make_fused_kernel(n_layers, S, Bp, H),
        out_shape=jax.ShapeDtypeStruct((S * Bp, O), jnp.float32),
        grid=(1,),
        in_specs=[_full_spec(x.shape) for x in inputs],
        out_specs=_full_spec((S * Bp, O)),
        compiler_params=pltpu.CompilerParams(
            dimension_semantics=("arbitrary",),
        ),
    )(*inputs)

    # Time-major [S*Bp, O] -> [B, S, O]; drop padded batch rows (tiny; left to XLA).
    return jnp.transpose(out.reshape(S, Bp, O)[:, :B, :], (1, 0, 2))


# --------------------------- parameter construction --------------------------

def init_params(key, input_dim, emb_dim, hidden_dim, output_dim, n_layers):
    keys = jax.random.split(key, 3 + 4 * n_layers)
    k_iter = iter(keys)

    params = {}
    # nn.Embedding: N(0, 1)
    params["embedding"] = jax.random.normal(
        next(k_iter), (input_dim, emb_dim), jnp.float32
    )

    # nn.RNN: uniform(-1/sqrt(H), 1/sqrt(H)); weights stored pre-transposed so
    # the math is x @ W_ih ([D,H]) and h @ W_hh ([H,H]).
    stdv = 1.0 / (hidden_dim ** 0.5)
    layers = []
    for li in range(n_layers):
        d_in = emb_dim if li == 0 else hidden_dim
        w_ih = jax.random.uniform(
            next(k_iter), (d_in, hidden_dim), jnp.float32, -stdv, stdv
        )
        w_hh = jax.random.uniform(
            next(k_iter), (hidden_dim, hidden_dim), jnp.float32, -stdv, stdv
        )
        b_ih = jax.random.uniform(
            next(k_iter), (1, hidden_dim), jnp.float32, -stdv, stdv
        )
        b_hh = jax.random.uniform(
            next(k_iter), (1, hidden_dim), jnp.float32, -stdv, stdv
        )
        layers.append({"w_ih": w_ih, "w_hh": w_hh, "b": b_ih + b_hh})
    params["rnn_layers"] = layers

    # nn.Linear(hidden_dim, output_dim)
    stdv_fc = 1.0 / (hidden_dim ** 0.5)
    params["fc_w"] = jax.random.uniform(
        next(k_iter), (hidden_dim, output_dim), jnp.float32, -stdv_fc, stdv_fc
    )
    params["fc_b"] = jax.random.uniform(
        next(k_iter), (1, output_dim), jnp.float32, -stdv_fc, stdv_fc
    )
    return params


# ------------------------------ pure-JAX reference ---------------------------

def reference_forward(src, params):
    emb = jnp.take(params["embedding"], src, axis=0)  # [B, S, E]
    x = jnp.transpose(emb, (1, 0, 2))                 # [S, B, E]
    for layer in params["rnn_layers"]:
        H = layer["w_hh"].shape[0]

        def step(h, x_t):
            h_new = jnp.tanh(x_t @ layer["w_ih"] + h @ layer["w_hh"] + layer["b"])
            return h_new, h_new

        h0 = jnp.zeros((x.shape[1], H), jnp.float32)
        _, x = lax.scan(step, h0, x)
    outputs = jnp.transpose(x, (1, 0, 2))
    return outputs @ params["fc_w"] + params["fc_b"]


# ----------------------------------- main ------------------------------------

if __name__ == "__main__":
    # Small shapes consistent with the module's forward.
    input_dim = 50     # vocab size
    emb_dim = 32
    hidden_dim = 32
    output_dim = 16
    n_layers = 2

    B, S = 2, 8

    key = jax.random.PRNGKey(0)
    k_tok, k_par = jax.random.split(key)
    src = jax.random.randint(k_tok, (B, S), 0, input_dim, dtype=jnp.int32)

    params = init_params(k_par, input_dim, emb_dim, hidden_dim, output_dim, n_layers)

    preds = jax.block_until_ready(simple_rnn_forward(src, params))
    assert preds.shape == (B, S, output_dim)

    ref = jax.block_until_ready(reference_forward(src, params))
    # Slightly looser than 1e-5: folded embedding projection, block-matrix
    # wavefront matmuls and the batched FC reassociate f32 accumulation vs the
    # layer-major scan reference (tanh is contractive, so errors don't amplify).
    assert jnp.allclose(preds, ref, atol=1e-4, rtol=1e-4), "mismatch vs reference"

    print("KERNEL_OK")
</pallas_src>

<mosaic_0001>
module attributes {stable_mosaic.version = 11 : i64} {
  func.func @kernel(%arg0: i32, %arg1: memref<64x1xi32, #tpu.memory_space<vmem>>, %arg2: memref<56x32xf32, #tpu.memory_space<vmem>>, %arg3: memref<64x64xf32, #tpu.memory_space<vmem>>, %arg4: memref<1x32xf32, #tpu.memory_space<vmem>>, %arg5: memref<32x16xf32, #tpu.memory_space<vmem>>, %arg6: memref<1x16xf32, #tpu.memory_space<vmem>>, %arg7: memref<64x16xf32, #tpu.memory_space<vmem>>) attributes {dimension_semantics = [#tpu.dimension_semantics<arbitrary>], iteration_bounds = array<i64: 1>, scalar_prefetch = 0 : i64, scratch_operands = 0 : i64, tpu.core_type = #tpu.core_type<tc>, window_params = [{pipeline_mode = #tpu.pipeline_mode<synchronous>, transform_indices = @transform_0, window_bounds = array<i64: 64, 1>}, {pipeline_mode = #tpu.pipeline_mode<synchronous>, transform_indices = @transform_1, window_bounds = array<i64: 56, 32>}, {pipeline_mode = #tpu.pipeline_mode<synchronous>, transform_indices = @transform_2, window_bounds = array<i64: 64, 64>}, {pipeline_mode = #tpu.pipeline_mode<synchronous>, transform_indices = @transform_3, window_bounds = array<i64: 1, 32>}, {pipeline_mode = #tpu.pipeline_mode<synchronous>, transform_indices = @transform_4, window_bounds = array<i64: 32, 16>}, {pipeline_mode = #tpu.pipeline_mode<synchronous>, transform_indices = @transform_5, window_bounds = array<i64: 1, 16>}, {pipeline_mode = #tpu.pipeline_mode<synchronous>, transform_indices = @transform_6, window_bounds = array<i64: 64, 16>}]} {
    %c0 = arith.constant 0 : index
    %c0_0 = arith.constant 0 : index
    %0 = vector.load %arg1[%c0, %c0_0] : memref<64x1xi32, #tpu.memory_space<vmem>>, vector<64x1xi32>
    %1 = tpu.iota {dimensions = array<i32: 1>} : vector<64x56xi32>
    %2 = vector.broadcast %0 : vector<64x1xi32> to vector<64x56xi32>
    %3 = arith.cmpi eq, %2, %1 : vector<64x56xi32>
    %cst = arith.constant 1.000000e+00 : f32
    %cst_1 = arith.constant 0.000000e+00 : f32
    %4 = vector.broadcast %cst : f32 to vector<64x56xf32>
    %5 = vector.broadcast %cst_1 : f32 to vector<64x56xf32>
    %6 = arith.select %3, %4, %5 : vector<64x56xi1>, vector<64x56xf32>
    %c0_2 = arith.constant 0 : index
    %c0_3 = arith.constant 0 : index
    %7 = vector.load %arg2[%c0_2, %c0_3] : memref<56x32xf32, #tpu.memory_space<vmem>>, vector<56x32xf32>
    %cst_4 = arith.constant dense<0.000000e+00> : vector<64x32xf32>
    %8 = tpu.matmul %6, %7, %cst_4 {dimension_numbers = #tpu.dot_dimension_numbers<[1], [0], [0], [1], [0, 0, 1, 1], [], []>} : vector<64x56xf32>, vector<56x32xf32>, vector<64x32xf32> -> vector<64x32xf32>
    %c0_5 = arith.constant 0 : index
    %c0_6 = arith.constant 0 : index
    %9 = vector.load %arg3[%c0_5, %c0_6] : memref<64x64xf32, #tpu.memory_space<vmem>>, vector<64x64xf32>
    %c0_7 = arith.constant 0 : index
    %c0_8 = arith.constant 0 : index
    %10 = vector.load %arg4[%c0_7, %c0_8] : memref<1x32xf32, #tpu.memory_space<vmem>>, vector<1x32xf32>
    %cst_9 = arith.constant 0.000000e+00 : f32
    %11 = vector.broadcast %cst_9 : f32 to vector<8x32xf32>
    %12 = vector.shape_cast %10 : vector<1x32xf32> to vector<1x32xf32>
    %13 = vector.broadcast %12 : vector<1x32xf32> to vector<8x32xf32>
    %14 = vector.extract_strided_slice %8 {offsets = [0, 0], sizes = [8, 32], strides = [1, 1]} : vector<64x32xf32> to vector<8x32xf32>
    %15 = tpu.concatenate %14, %11 in 1 : vector<8x32xf32>, vector<8x32xf32> -> vector<8x64xf32>
    %16 = vector.extract_strided_slice %8 {offsets = [8, 0], sizes = [8, 32], strides = [1, 1]} : vector<64x32xf32> to vector<8x32xf32>
    %17 = tpu.concatenate %16, %13 in 1 : vector<8x32xf32>, vector<8x32xf32> -> vector<8x64xf32>
    %18 = vector.extract_strided_slice %8 {offsets = [16, 0], sizes = [8, 32], strides = [1, 1]} : vector<64x32xf32> to vector<8x32xf32>
    %19 = tpu.concatenate %18, %13 in 1 : vector<8x32xf32>, vector<8x32xf32> -> vector<8x64xf32>
    %20 = vector.extract_strided_slice %8 {offsets = [24, 0], sizes = [8, 32], strides = [1, 1]} : vector<64x32xf32> to vector<8x32xf32>
    %21 = tpu.concatenate %20, %13 in 1 : vector<8x32xf32>, vector<8x32xf32> -> vector<8x64xf32>
    %22 = vector.extract_strided_slice %8 {offsets = [32, 0], sizes = [8, 32], strides = [1, 1]} : vector<64x32xf32> to vector<8x32xf32>
    %23 = tpu.concatenate %22, %13 in 1 : vector<8x32xf32>, vector<8x32xf32> -> vector<8x64xf32>
    %24 = vector.extract_strided_slice %8 {offsets = [40, 0], sizes = [8, 32], strides = [1, 1]} : vector<64x32xf32> to vector<8x32xf32>
    %25 = tpu.concatenate %24, %13 in 1 : vector<8x32xf32>, vector<8x32xf32> -> vector<8x64xf32>
    %26 = vector.extract_strided_slice %8 {offsets = [48, 0], sizes = [8, 32], strides = [1, 1]} : vector<64x32xf32> to vector<8x32xf32>
    %27 = tpu.concatenate %26, %13 in 1 : vector<8x32xf32>, vector<8x32xf32> -> vector<8x64xf32>
    %28 = vector.extract_strided_slice %8 {offsets = [56, 0], sizes = [8, 32], strides = [1, 1]} : vector<64x32xf32> to vector<8x32xf32>
    %29 = tpu.concatenate %28, %13 in 1 : vector<8x32xf32>, vector<8x32xf32> -> vector<8x64xf32>
    %30 = tpu.concatenate %11, %13 in 1 : vector<8x32xf32>, vector<8x32xf32> -> vector<8x64xf32>
    %cst_10 = arith.constant 0.000000e+00 : f32
    %31 = vector.broadcast %cst_10 : f32 to vector<8x64xf32>
    %cst_11 = arith.constant dense<0.000000e+00> : vector<8x64xf32>
    %32 = tpu.matmul %31, %9, %cst_11 {dimension_numbers = #tpu.dot_dimension_numbers<[1], [0], [0], [1], [0, 0, 1, 1], [], []>} : vector<8x64xf32>, vector<64x64xf32>, vector<8x64xf32> -> vector<8x64xf32>
    %33 = arith.addf %15, %32 : vector<8x64xf32>
    %34 = math.tanh %33 : vector<8x64xf32>
    %cst_12 = arith.constant dense<0.000000e+00> : vector<8x64xf32>
    %35 = tpu.matmul %34, %9, %cst_12 {dimension_numbers = #tpu.dot_dimension_numbers<[1], [0], [0], [1], [0, 0, 1, 1], [], []>} : vector<8x64xf32>, vector<64x64xf32>, vector<8x64xf32> -> vector<8x64xf32>
    %36 = arith.addf %17, %35 : vector<8x64xf32>
    %37 = math.tanh %36 : vector<8x64xf32>
    %38 = vector.extract_strided_slice %37 {offsets = [0, 32], sizes = [8, 32], strides = [1, 1]} : vector<8x64xf32> to vector<8x32xf32>
    %cst_13 = arith.constant dense<0.000000e+00> : vector<8x64xf32>
    %39 = tpu.matmul %37, %9, %cst_13 {dimension_numbers = #tpu.dot_dimension_numbers<[1], [0], [0], [1], [0, 0, 1, 1], [], []>} : vector<8x64xf32>, vector<64x64xf32>, vector<8x64xf32> -> vector<8x64xf32>
    %40 = arith.addf %19, %39 : vector<8x64xf32>
    %41 = math.tanh %40 : vector<8x64xf32>
    %42 = vector.extract_strided_slice %41 {offsets = [0, 32], sizes = [8, 32], strides = [1, 1]} : vector<8x64xf32> to vector<8x32xf32>
    %cst_14 = arith.constant dense<0.000000e+00> : vector<8x64xf32>
    %43 = tpu.matmul %41, %9, %cst_14 {dimension_numbers = #tpu.dot_dimension_numbers<[1], [0], [0], [1], [0, 0, 1, 1], [], []>} : vector<8x64xf32>, vector<64x64xf32>, vector<8x64xf32> -> vector<8x64xf32>
    %44 = arith.addf %21, %43 : vector<8x64xf32>
    %45 = math.tanh %44 : vector<8x64xf32>
    %46 = vector.extract_strided_slice %45 {offsets = [0, 32], sizes = [8, 32], strides = [1, 1]} : vector<8x64xf32> to vector<8x32xf32>
    %cst_15 = arith.constant dense<0.000000e+00> : vector<8x64xf32>
    %47 = tpu.matmul %45, %9, %cst_15 {dimension_numbers = #tpu.dot_dimension_numbers<[1], [0], [0], [1], [0, 0, 1, 1], [], []>} : vector<8x64xf32>, vector<64x64xf32>, vector<8x64xf32> -> vector<8x64xf32>
    %48 = arith.addf %23, %47 : vector<8x64xf32>
    %49 = math.tanh %48 : vector<8x64xf32>
    %50 = vector.extract_strided_slice %49 {offsets = [0, 32], sizes = [8, 32], strides = [1, 1]} : vector<8x64xf32> to vector<8x32xf32>
    %cst_16 = arith.constant dense<0.000000e+00> : vector<8x64xf32>
    %51 = tpu.matmul %49, %9, %cst_16 {dimension_numbers = #tpu.dot_dimension_numbers<[1], [0], [0], [1], [0, 0, 1, 1], [], []>} : vector<8x64xf32>, vector<64x64xf32>, vector<8x64xf32> -> vector<8x64xf32>
    %52 = arith.addf %25, %51 : vector<8x64xf32>
    %53 = math.tanh %52 : vector<8x64xf32>
    %54 = vector.extract_strided_slice %53 {offsets = [0, 32], sizes = [8, 32], strides = [1, 1]} : vector<8x64xf32> to vector<8x32xf32>
    %cst_17 = arith.constant dense<0.000000e+00> : vector<8x64xf32>
    %55 = tpu.matmul %53, %9, %cst_17 {dimension_numbers = #tpu.dot_dimension_numbers<[1], [0], [0], [1], [0, 0, 1, 1], [], []>} : vector<8x64xf32>, vector<64x64xf32>, vector<8x64xf32> -> vector<8x64xf32>
    %56 = arith.addf %27, %55 : vector<8x64xf32>
    %57 = math.tanh %56 : vector<8x64xf32>
    %58 = vector.extract_strided_slice %57 {offsets = [0, 32], sizes = [8, 32], strides = [1, 1]} : vector<8x64xf32> to vector<8x32xf32>
    %cst_18 = arith.constant dense<0.000000e+00> : vector<8x64xf32>
    %59 = tpu.matmul %57, %9, %cst_18 {dimension_numbers = #tpu.dot_dimension_numbers<[1], [0], [0], [1], [0, 0, 1, 1], [], []>} : vector<8x64xf32>, vector<64x64xf32>, vector<8x64xf32> -> vector<8x64xf32>
    %60 = arith.addf %29, %59 : vector<8x64xf32>
    %61 = math.tanh %60 : vector<8x64xf32>
    %62 = vector.extract_strided_slice %61 {offsets = [0, 32], sizes = [8, 32], strides = [1, 1]} : vector<8x64xf32> to vector<8x32xf32>
    %cst_19 = arith.constant dense<0.000000e+00> : vector<8x64xf32>
    %63 = tpu.matmul %61, %9, %cst_19 {dimension_numbers = #tpu.dot_dimension_numbers<[1], [0], [0], [1], [0, 0, 1, 1], [], []>} : vector<8x64xf32>, vector<64x64xf32>, vector<8x64xf32> -> vector<8x64xf32>
    %64 = arith.addf %30, %63 : vector<8x64xf32>
    %65 = math.tanh %64 : vector<8x64xf32>
    %66 = vector.extract_strided_slice %65 {offsets = [0, 32], sizes = [8, 32], strides = [1, 1]} : vector<8x64xf32> to vector<8x32xf32>
    %67 = tpu.concatenate %38, %42, %46, %50, %54, %58, %62, %66 in 0 : vector<8x32xf32>, vector<8x32xf32>, vector<8x32xf32>, vector<8x32xf32>, vector<8x32xf32>, vector<8x32xf32>, vector<8x32xf32>, vector<8x32xf32> -> vector<64x32xf32>
    %c0_20 = arith.constant 0 : index
    %c0_21 = arith.constant 0 : index
    %68 = vector.load %arg5[%c0_20, %c0_21] : memref<32x16xf32, #tpu.memory_space<vmem>>, vector<32x16xf32>
    %cst_22 = arith.constant dense<0.000000e+00> : vector<64x16xf32>
    %69 = tpu.matmul %67, %68, %cst_22 {dimension_numbers = #tpu.dot_dimension_numbers<[1], [0], [0], [1], [0, 0, 1, 1], [], []>} : vector<64x32xf32>, vector<32x16xf32>, vector<64x16xf32> -> vector<64x16xf32>
    %c0_23 = arith.constant 0 : index
    %c0_24 = arith.constant 0 : index
    %70 = vector.load %arg6[%c0_23, %c0_24] : memref<1x16xf32, #tpu.memory_space<vmem>>, vector<1x16xf32>
    %71 = vector.broadcast %70 : vector<1x16xf32> to vector<64x16xf32>
    %72 = arith.addf %69, %71 : vector<64x16xf32>
    %c0_25 = arith.constant 0 : index
    %c0_26 = arith.constant 0 : index
    %73 = vector.load %arg7[%c0_25, %c0_26] : memref<64x16xf32, #tpu.memory_space<vmem>>, vector<64x16xf32>
    tpu.vector_store %arg7[%c0_25, %c0_26], %72 {strides = array<i32>} : memref<64x16xf32, #tpu.memory_space<vmem>>, vector<64x16xf32>,
    return
  }
  func.func @transform_0(%arg0: i32) -> (i32, i32) {
    %c0_i32 = arith.constant 0 : i32
    %c0_i32_0 = arith.constant 0 : i32
    %c0_i32_1 = arith.constant 0 : i32
    return %c0_i32, %c0_i32_0 : i32, i32
  }
  func.func @transform_1(%arg0: i32) -> (i32, i32) {
    %c0_i32 = arith.constant 0 : i32
    %c0_i32_0 = arith.constant 0 : i32
    %c0_i32_1 = arith.constant 0 : i32
    return %c0_i32, %c0_i32_0 : i32, i32
  }
  func.func @transform_2(%arg0: i32) -> (i32, i32) {
    %c0_i32 = arith.constant 0 : i32
    %c0_i32_0 = arith.constant 0 : i32
    %c0_i32_1 = arith.constant 0 : i32
    return %c0_i32, %c0_i32_0 : i32, i32
  }
  func.func @transform_3(%arg0: i32) -> (i32, i32) {
    %c0_i32 = arith.constant 0 : i32
    %c0_i32_0 = arith.constant 0 : i32
    %c0_i32_1 = arith.constant 0 : i32
    return %c0_i32, %c0_i32_0 : i32, i32
  }
  func.func @transform_4(%arg0: i32) -> (i32, i32) {
    %c0_i32 = arith.constant 0 : i32
    %c0_i32_0 = arith.constant 0 : i32
    %c0_i32_1 = arith.constant 0 : i32
    return %c0_i32, %c0_i32_0 : i32, i32
  }
  func.func @transform_5(%arg0: i32) -> (i32, i32) {
    %c0_i32 = arith.constant 0 : i32
    %c0_i32_0 = arith.constant 0 : i32
    %c0_i32_1 = arith.constant 0 : i32
    return %c0_i32, %c0_i32_0 : i32, i32
  }
  func.func @transform_6(%arg0: i32) -> (i32, i32) {
    %c0_i32 = arith.constant 0 : i32
    %c0_i32_0 = arith.constant 0 : i32
    %c0_i32_1 = arith.constant 0 : i32
    return %c0_i32, %c0_i32_0 : i32, i32
  }
}

</mosaic_0001>

<llo_original>
// kernel: tpu_custom_call.1
$region0: #{tpu_custom_call.1}
  #allocation0 [shape = 'u32[]', space=smem, size = 0x4, offset = 0x4, fixed_abs, tag = 'smem constant byte address 0x4 - core index']
  #allocation1 [shape = 'u32[144,128]{1,0:T(1,128)}', space=vmem, size = 0x12000, scoped, tag = 'internal scratch']
  %s0 = inlined_call_operand.vmem [shape: s32[64,1], index: 0, kind: input, shape index: {}]
  %s1 = inlined_call_operand.vmem [shape: f32[56,32], index: 1, kind: input, shape index: {}]
  %s2 = inlined_call_operand.vmem [shape: f32[64,64], index: 2, kind: input, shape index: {}]
  %s3 = inlined_call_operand.vmem [shape: f32[1,32], index: 3, kind: input, shape index: {}]
  %s4 = inlined_call_operand.vmem [shape: f32[32,16], index: 4, kind: input, shape index: {}]
  %s5 = inlined_call_operand.vmem [shape: f32[1,16], index: 5, kind: input, shape index: {}]
  %s6 = inlined_call_operand.vmem [shape: f32[64,16], index: 6, kind: output, shape index: {}]
  %s7 = sld [smem:[#allocation0]]
  $region34: #{tpu_custom_call.1} parent=0
    _
  %s9 = ssub.s32 1, %s7
  %s10 = scalar_select 0, %s9, %s7
  // Predicated region
  $region2: #{tpu_custom_call.1} parent=0 // pred_check
    _
  $region3: #{tpu_custom_call.1} parent=0 // pred_check_branch
    %12 = sbr.rel (0) target = $region5
  $region4: #{tpu_custom_call.1} parent=0 // pred_region
    _
  $region5: #{tpu_custom_call.1} parent=0 // pred_fallthru
    _
  // Predicated region
  $region6: #{tpu_custom_call.1} parent=0 // pred_check
    _
  $region7: #{tpu_custom_call.1} parent=0 // pred_check_branch
    %14 = sbr.rel (0) target = $region9
  $region8: #{tpu_custom_call.1} parent=0 // pred_region
    _
  $region9: #{tpu_custom_call.1} parent=0 // pred_fallthru
    _
  // Predicated region
  $region10: #{tpu_custom_call.1} parent=0 // pred_check
    _
  $region11: #{tpu_custom_call.1} parent=0 // pred_check_branch
    %16 = sbr.rel (0) target = $region13
  $region12: #{tpu_custom_call.1} parent=0 // pred_region
    _
  $region13: #{tpu_custom_call.1} parent=0 // pred_fallthru
    _
  // Predicated region
  $region14: #{tpu_custom_call.1} parent=0 // pred_check
    _
  $region15: #{tpu_custom_call.1} parent=0 // pred_check_branch
    %18 = sbr.rel (0) target = $region17
  $region16: #{tpu_custom_call.1} parent=0 // pred_region
    _
  $region17: #{tpu_custom_call.1} parent=0 // pred_fallthru
    _
  // Predicated region
  $region18: #{tpu_custom_call.1} parent=0 // pred_check
    _
  $region19: #{tpu_custom_call.1} parent=0 // pred_check_branch
    %20 = sbr.rel (0) target = $region21
  $region20: #{tpu_custom_call.1} parent=0 // pred_region
    _
  $region21: #{tpu_custom_call.1} parent=0 // pred_fallthru
    _
  // Predicated region
  $region22: #{tpu_custom_call.1} parent=0 // pred_check
    _
  $region23: #{tpu_custom_call.1} parent=0 // pred_check_branch
    %22 = sbr.rel (0) target = $region25
  $region24: #{tpu_custom_call.1} parent=0 // pred_region
    _
  $region25: #{tpu_custom_call.1} parent=0 // pred_fallthru
    _
  %v23 = vld [vmem:[%s0] sm:$0xff]
  %v24 = vld [vmem:[%s0 + $0x8] sm:$0xff]
  %v25 = vld [vmem:[%s0 + $0x10] sm:$0xff]
  %v26 = vld [vmem:[%s0 + $0x18] sm:$0xff]
  %v27 = vld [vmem:[%s0 + $0x20] sm:$0xff]
  %v28 = vld [vmem:[%s0 + $0x28] sm:$0xff]
  %v29 = vld [vmem:[%s0 + $0x30] sm:$0xff]
  %v30 = vld [vmem:[%s0 + $0x38] sm:$0xff]
  %v31 = vlaneseq
  %v32 = vand.u32 %v31, 127
  %33 = vset.pattern.permute.xlu0 0
  %34 = vperm.xlu0 %33, %v23
  %v35 = vpop.permute.xlu0 %34
  %36 = vset.pattern.permute.xlu0 0
  %37 = vperm.xlu0 %36, %v24
  %v38 = vpop.permute.xlu0 %37
  %39 = vset.pattern.permute.xlu0 0
  %40 = vperm.xlu0 %39, %v25
  %v41 = vpop.permute.xlu0 %40
  %42 = vset.pattern.permute.xlu0 0
  %43 = vperm.xlu0 %42, %v26
  %v44 = vpop.permute.xlu0 %43
  %45 = vset.pattern.permute.xlu0 0
  %46 = vperm.xlu0 %45, %v27
  %v47 = vpop.permute.xlu0 %46
  %48 = vset.pattern.permute.xlu0 0
  %49 = vperm.xlu0 %48, %v28
  %v50 = vpop.permute.xlu0 %49
  %51 = vset.pattern.permute.xlu0 0
  %52 = vperm.xlu0 %51, %v29
  %v53 = vpop.permute.xlu0 %52
  %54 = vset.pattern.permute.xlu0 0
  %55 = vperm.xlu0 %54, %v30
  %v56 = vpop.permute.xlu0 %55
  %vm57 = vcmp.eq.s32.totalorder %v35, %v32
  %vm58 = vcmp.eq.s32.totalorder %v38, %v32
  %vm59 = vcmp.eq.s32.totalorder %v41, %v32
  %vm60 = vcmp.eq.s32.totalorder %v44, %v32
  %vm61 = vcmp.eq.s32.totalorder %v47, %v32
  %vm62 = vcmp.eq.s32.totalorder %v50, %v32
  %vm63 = vcmp.eq.s32.totalorder %v53, %v32
  %vm64 = vcmp.eq.s32.totalorder %v56, %v32
  %v65 = vsel %vm57, 1.0, 0.0
  %v66 = vsel %vm58, 1.0, 0.0
  %v67 = vsel %vm59, 1.0, 0.0
  %v68 = vsel %vm60, 1.0, 0.0
  %v69 = vsel %vm61, 1.0, 0.0
  %v70 = vsel %vm62, 1.0, 0.0
  %v71 = vsel %vm63, 1.0, 0.0
  %v72 = vsel %vm64, 1.0, 0.0
  %v73 = vld [vmem:[%s1] sm:$0xff]
  %v74 = vld [vmem:[%s1 + $0x8] sm:$0xff]
  %v75 = vld [vmem:[%s1 + $0x10] sm:$0xff]
  %v76 = vld [vmem:[%s1 + $0x18] sm:$0xff]
  %v77 = vld [vmem:[%s1 + $0x20] sm:$0xff]
  %v78 = vld [vmem:[%s1 + $0x28] sm:$0xff]
  %v79 = vld [vmem:[%s1 + $0x30] sm:$0xff]
  %vm80 = vcmask 457728
  %v82 = vsel %vm80, %v65, 0
  %v85 = vsel %vm80, %v66, 0
  %v88 = vsel %vm80, %v67, 0
  %v91 = vsel %vm80, %v68, 0
  %v94 = vsel %vm80, %v69, 0
  %v97 = vsel %vm80, %v70, 0
  %v100 = vsel %vm80, %v71, 0
  %v103 = vsel %vm80, %v72, 0
  %105 = vmatprep.subr.mxu0 0.0
  %106 = vmatpush1.msra.mxu0 %v73
  %107 = vmatprep.subr.mxu0 0.0
  %108 = vmatpush1.msra.mxu0 %v74
  %109 = vmatprep.subr.mxu0 0.0
  %110 = vmatpush1.msra.mxu0 %v75
  %111 = vmatprep.subr.mxu0 0.0
  %112 = vmatpush1.msra.mxu0 %v76
  %113 = vmatprep.subr.mxu0 0.0
  %114 = vmatpush1.msra.mxu0 %v77
  %115 = vmatprep.subr.mxu0 0.0
  %116 = vmatpush1.msra.mxu0 %v78
  %117 = vmatprep.subr.mxu0 0.0
  %118 = vmatpush1.msra.mxu0 %v79
  %119 = vmatprep.subr.mxu0 0.0
  %120 = vmatpush1.msra.mxu0 0.0
  %121 = vmatprep.subr.mxu0 0.0
  %122 = vmatpush1.msra.mxu0 0.0
  %123 = vmatprep.subr.mxu0 0.0
  %124 = vmatpush1.msra.mxu0 0.0
  %125 = vmatprep.subr.mxu0 0.0
  %126 = vmatpush1.msra.mxu0 0.0
  %127 = vmatprep.subr.mxu0 0.0
  %128 = vmatpush1.msra.mxu0 0.0
  %129 = vmatprep.subr.mxu0 0.0
  %130 = vmatpush1.msra.mxu0 0.0
  %131 = vmatprep.subr.mxu0 0.0
  %132 = vmatpush1.msra.mxu0 0.0
  %133 = vmatprep.subr.mxu0 0.0
  %134 = vmatpush1.msra.mxu0 0.0
  %135 = vmatprep.subr.mxu0 0.0
  %136 = vmatpush1.msra.mxu0 0.0
  %137 = vmatprep.subr.mxu0 0.0
  %138 = vmatpush1.msra.mxu0 0.0
  %139 = vmatprep.subr.mxu0 0.0
  %140 = vmatpush1.msra.mxu0 0.0
  %141 = vmatprep.subr.mxu0 0.0
  %142 = vmatpush1.msra.mxu0 0.0
  %143 = vmatprep.subr.mxu0 0.0
  %144 = vmatpush1.msra.mxu0 0.0
  %145 = vmatprep.subr.mxu0 0.0
  %146 = vmatpush1.msra.mxu0 0.0
  %147 = vmatprep.subr.mxu0 0.0
  %148 = vmatpush1.msra.mxu0 0.0
  %149 = vmatprep.subr.mxu0 0.0
  %150 = vmatpush1.msra.mxu0 0.0
  %151 = vmatprep.subr.mxu0 0.0
  %152 = vmatpush1.msra.mxu0 0.0
  %153 = vmatprep.subr.mxu0 0.0
  %154 = vmatpush1.msra.mxu0 0.0
  %155 = vmatprep.subr.mxu0 0.0
  %156 = vmatpush1.msra.mxu0 0.0
  %157 = vmatprep.subr.mxu0 0.0
  %158 = vmatpush1.msra.mxu0 0.0
  %159 = vmatprep.subr.mxu0 0.0
  %160 = vmatpush1.msra.mxu0 0.0
  %161 = vmatprep.subr.mxu0 0.0
  %162 = vmatpush1.msra.mxu0 0.0
  %163 = vmatprep.subr.mxu0 0.0
  %164 = vmatpush1.msra.mxu0 0.0
  %165 = vmatprep.subr.mxu0 0.0
  %166 = vmatpush1.msra.mxu0 0.0
  %167 = vmatprep.subr.mxu0 0.0
  %168 = vmatpush1.msra.mxu0 0.0
  %169 = vmatprep.mubr.f32.mxu0 0.0
  %170 = vmatmul.mubr.f32.gmra.mrb[0].mxu0 %v82
  %v171 = vpop.f32.mrb[0].mxu0
  %v172 = vadd.f32 0.0, %v171
  %v173 = vpop.f32.mrb[0].mxu0
  %174 = vmatprep.mubr.f32.mxu0 0.0
  %175 = vmatmul.mubr.f32.gmra.mrb[0].mxu0 %v85
  %v176 = vpop.f32.mrb[0].mxu0
  %v177 = vadd.f32 0.0, %v176
  %v178 = vpop.f32.mrb[0].mxu0
  %179 = vmatprep.mubr.f32.mxu0 0.0
  %180 = vmatmul.mubr.f32.gmra.mrb[0].mxu0 %v88
  %v181 = vpop.f32.mrb[0].mxu0
  %v182 = vadd.f32 0.0, %v181
  %v183 = vpop.f32.mrb[0].mxu0
  %184 = vmatprep.mubr.f32.mxu0 0.0
  %185 = vmatmul.mubr.f32.gmra.mrb[0].mxu0 %v91
  %v186 = vpop.f32.mrb[0].mxu0
  %v187 = vadd.f32 0.0, %v186
  %v188 = vpop.f32.mrb[0].mxu0
  %189 = vmatprep.mubr.f32.mxu0 0.0
  %190 = vmatmul.mubr.f32.gmra.mrb[0].mxu0 %v94
  %v191 = vpop.f32.mrb[0].mxu0
  %v192 = vadd.f32 0.0, %v191
  %v193 = vpop.f32.mrb[0].mxu0
  %194 = vmatprep.mubr.f32.mxu0 0.0
  %195 = vmatmul.mubr.f32.gmra.mrb[0].mxu0 %v97
  %v196 = vpop.f32.mrb[0].mxu0
  %v197 = vadd.f32 0.0, %v196
  %v198 = vpop.f32.mrb[0].mxu0
  %199 = vmatprep.mubr.f32.mxu0 0.0
  %200 = vmatmul.mubr.f32.gmra.mrb[0].mxu0 %v100
  %v201 = vpop.f32.mrb[0].mxu0
  %v202 = vadd.f32 0.0, %v201
  %v203 = vpop.f32.mrb[0].mxu0
  %204 = vmatprep.mubr.f32.mxu0 0.0
  %205 = vmatmul.mubr.f32.gmra.mrb[0].mxu0 %v103
  %v206 = vpop.f32.mrb[0].mxu0
  %v207 = vadd.f32 0.0, %v206
  %v208 = vpop.f32.mrb[0].mxu0
  %209 = vdwg.mxu0
  %v210 = vld [vmem:[%s2] sm:$0xff]
  %v211 = vld [vmem:[%s2 + $0x8] sm:$0xff]
  %v212 = vld [vmem:[%s2 + $0x10] sm:$0xff]
  %v213 = vld [vmem:[%s2 + $0x18] sm:$0xff]
  %v214 = vld [vmem:[%s2 + $0x20] sm:$0xff]
  %v215 = vld [vmem:[%s2 + $0x28] sm:$0xff]
  %v216 = vld [vmem:[%s2 + $0x30] sm:$0xff]
  %v217 = vld [vmem:[%s2 + $0x38] sm:$0xff]
  %v218 = vld [vmem:[%s3] sm:$0x1]
  %v220 = vlaneseq
  %v221 = vshrl.u32 %v220, 7
  %v222 = vsub.s32 0, %v221
  %v223 = vrot.slane %v218, %v222
  %vm224 = vcmask 261120
  %v225 = vsel %vm224, %v172, 0.0
  %226 = vrot.lane.b32.xlu0 %v223, 32
  %v227 = vpop.permute.xlu0 %226
  %v229 = vsel %vm224, %v177, %v227
  %v230 = vsel %vm224, %v182, %v227
  %v231 = vsel %vm224, %v187, %v227
  %v232 = vsel %vm224, %v192, %v227
  %v233 = vsel %vm224, %v197, %v227
  %v234 = vsel %vm224, %v202, %v227
  %v235 = vsel %vm224, %v207, %v227
  %v236 = vsel %vm224, 0.0, %v227
  %vm237 = vcmask 523264
  %v239 = vsel %vm237, 0.0, 0
  %241 = vmatprep.subr.mxu0 0.0
  %242 = vmatpush1.msra.mxu0 %v210
  %243 = vmatprep.subr.mxu0 0.0
  %244 = vmatpush1.msra.mxu0 %v211
  %245 = vmatprep.subr.mxu0 0.0
  %246 = vmatpush1.msra.mxu0 %v212
  %247 = vmatprep.subr.mxu0 0.0
  %248 = vmatpush1.msra.mxu0 %v213
  %249 = vmatprep.subr.mxu0 0.0
  %250 = vmatpush1.msra.mxu0 %v214
  %251 = vmatprep.subr.mxu0 0.0
  %252 = vmatpush1.msra.mxu0 %v215
  %253 = vmatprep.subr.mxu0 0.0
  %254 = vmatpush1.msra.mxu0 %v216
  %255 = vmatprep.subr.mxu0 0.0
  %256 = vmatpush1.msra.mxu0 %v217
  %257 = vmatprep.subr.mxu0 0.0
  %258 = vmatpush1.msra.mxu0 0.0
  %259 = vmatprep.subr.mxu0 0.0
  %260 = vmatpush1.msra.mxu0 0.0
  %261 = vmatprep.subr.mxu0 0.0
  %262 = vmatpush1.msra.mxu0 0.0
  %263 = vmatprep.subr.mxu0 0.0
  %264 = vmatpush1.msra.mxu0 0.0
  %265 = vmatprep.subr.mxu0 0.0
  %266 = vmatpush1.msra.mxu0 0.0
  %267 = vmatprep.subr.mxu0 0.0
  %268 = vmatpush1.msra.mxu0 0.0
  %269 = vmatprep.subr.mxu0 0.0
  %270 = vmatpush1.msra.mxu0 0.0
  %271 = vmatprep.subr.mxu0 0.0
  %272 = vmatpush1.msra.mxu0 0.0
  %273 = vmatprep.subr.mxu0 0.0
  %274 = vmatpush1.msra.mxu0 0.0
  %275 = vmatprep.subr.mxu0 0.0
  %276 = vmatpush1.msra.mxu0 0.0
  %277 = vmatprep.subr.mxu0 0.0
  %278 = vmatpush1.msra.mxu0 0.0
  %279 = vmatprep.subr.mxu0 0.0
  %280 = vmatpush1.msra.mxu0 0.0
  %281 = vmatprep.subr.mxu0 0.0
  %282 = vmatpush1.msra.mxu0 0.0
  %283 = vmatprep.subr.mxu0 0.0
  %284 = vmatpush1.msra.mxu0 0.0
  %285 = vmatprep.subr.mxu0 0.0
  %286 = vmatpush1.msra.mxu0 0.0
  %287 = vmatprep.subr.mxu0 0.0
  %288 = vmatpush1.msra.mxu0 0.0
  %289 = vmatprep.subr.mxu0 0.0
  %290 = vmatpush1.msra.mxu0 0.0
  %291 = vmatprep.subr.mxu0 0.0
  %292 = vmatpush1.msra.mxu0 0.0
  %293 = vmatprep.subr.mxu0 0.0
  %294 = vmatpush1.msra.mxu0 0.0
  %295 = vmatprep.subr.mxu0 0.0
  %296 = vmatpush1.msra.mxu0 0.0
  %297 = vmatprep.subr.mxu0 0.0
  %298 = vmatpush1.msra.mxu0 0.0
  %299 = vmatprep.subr.mxu0 0.0
  %300 = vmatpush1.msra.mxu0 0.0
  %301 = vmatprep.subr.mxu0 0.0
  %302 = vmatpush1.msra.mxu0 0.0
  %303 = vmatprep.subr.mxu0 0.0
  %304 = vmatpush1.msra.mxu0 0.0
  %305 = vmatprep.mubr.f32.mxu0 0.0
  %306 = vmatmul.mubr.f32.gmra.mrb[0].mxu0 %v239
  %v307 = vpop.f32.mrb[0].mxu0
  %v308 = vadd.f32 0.0, %v307
  %v309 = vpop.f32.mrb[0].mxu0
  %310 = vdwg.mxu0
  %v311 = vadd.f32 %v225, %v308
  %v312 = vtanh.pop %v311
  %v314 = vsel %vm237, %v312, 0
  %316 = vmatprep.subr.mxu0 0.0
  %317 = vmatpush1.msra.mxu0 %v210
  %318 = vmatprep.subr.mxu0 0.0
  %319 = vmatpush1.msra.mxu0 %v211
  %320 = vmatprep.subr.mxu0 0.0
  %321 = vmatpush1.msra.mxu0 %v212
  %322 = vmatprep.subr.mxu0 0.0
  %323 = vmatpush1.msra.mxu0 %v213
  %324 = vmatprep.subr.mxu0 0.0
  %325 = vmatpush1.msra.mxu0 %v214
  %326 = vmatprep.subr.mxu0 0.0
  %327 = vmatpush1.msra.mxu0 %v215
  %328 = vmatprep.subr.mxu0 0.0
  %329 = vmatpush1.msra.mxu0 %v216
  %330 = vmatprep.subr.mxu0 0.0
  %331 = vmatpush1.msra.mxu0 %v217
  %332 = vmatprep.subr.mxu0 0.0
  %333 = vmatpush1.msra.mxu0 0.0
  %334 = vmatprep.subr.mxu0 0.0
  %335 = vmatpush1.msra.mxu0 0.0
  %336 = vmatprep.subr.mxu0 0.0
  %337 = vmatpush1.msra.mxu0 0.0
  %338 = vmatprep.subr.mxu0 0.0
  %339 = vmatpush1.msra.mxu0 0.0
  %340 = vmatprep.subr.mxu0 0.0
  %341 = vmatpush1.msra.mxu0 0.0
  %342 = vmatprep.subr.mxu0 0.0
  %343 = vmatpush1.msra.mxu0 0.0
  %344 = vmatprep.subr.mxu0 0.0
  %345 = vmatpush1.msra.mxu0 0.0
  %346 = vmatprep.subr.mxu0 0.0
  %347 = vmatpush1.msra.mxu0 0.0
  %348 = vmatprep.subr.mxu0 0.0
  %349 = vmatpush1.msra.mxu0 0.0
  %350 = vmatprep.subr.mxu0 0.0
  %351 = vmatpush1.msra.mxu0 0.0
  %352 = vmatprep.subr.mxu0 0.0
  %353 = vmatpush1.msra.mxu0 0.0
  %354 = vmatprep.subr.mxu0 0.0
  %355 = vmatpush1.msra.mxu0 0.0
  %356 = vmatprep.subr.mxu0 0.0
  %357 = vmatpush1.msra.mxu0 0.0
  %358 = vmatprep.subr.mxu0 0.0
  %359 = vmatpush1.msra.mxu0 0.0
  %360 = vmatprep.subr.mxu0 0.0
  %361 = vmatpush1.msra.mxu0 0.0
  %362 = vmatprep.subr.mxu0 0.0
  %363 = vmatpush1.msra.mxu0 0.0
  %364 = vmatprep.subr.mxu0 0.0
  %365 = vmatpush1.msra.mxu0 0.0
  %366 = vmatprep.subr.mxu0 0.0
  %367 = vmatpush1.msra.mxu0 0.0
  %368 = vmatprep.subr.mxu0 0.0
  %369 = vmatpush1.msra.mxu0 0.0
  %370 = vmatprep.subr.mxu0 0.0
  %371 = vmatpush1.msra.mxu0 0.0
  %372 = vmatprep.subr.mxu0 0.0
  %373 = vmatpush1.msra.mxu0 0.0
  %374 = vmatprep.subr.mxu0 0.0
  %375 = vmatpush1.msra.mxu0 0.0
  %376 = vmatprep.subr.mxu0 0.0
  %377 = vmatpush1.msra.mxu0 0.0
  %378 = vmatprep.subr.mxu0 0.0
  %379 = vmatpush1.msra.mxu0 0.0
  %380 = vmatprep.mubr.f32.mxu0 0.0
  %381 = vmatmul.mubr.f32.gmra.mrb[0].mxu0 %v314
  %v382 = vpop.f32.mrb[0].mxu0
  %v383 = vadd.f32 0.0, %v382
  %v384 = vpop.f32.mrb[0].mxu0
  %385 = vdwg.mxu0
  %v386 = vadd.f32 %v229, %v383
  %v387 = vtanh.pop %v386
  %v389 = vsel %vm237, %v387, 0
  %391 = vmatprep.subr.mxu0 0.0
  %392 = vmatpush1.msra.mxu0 %v210
  %393 = vmatprep.subr.mxu0 0.0
  %394 = vmatpush1.msra.mxu0 %v211
  %395 = vmatprep.subr.mxu0 0.0
  %396 = vmatpush1.msra.mxu0 %v212
  %397 = vmatprep.subr.mxu0 0.0
  %398 = vmatpush1.msra.mxu0 %v213
  %399 = vmatprep.subr.mxu0 0.0
  %400 = vmatpush1.msra.mxu0 %v214
  %401 = vmatprep.subr.mxu0 0.0
  %402 = vmatpush1.msra.mxu0 %v215
  %403 = vmatprep.subr.mxu0 0.0
  %404 = vmatpush1.msra.mxu0 %v216
  %405 = vmatprep.subr.mxu0 0.0
  %406 = vmatpush1.msra.mxu0 %v217
  %407 = vmatprep.subr.mxu0 0.0
  %408 = vmatpush1.msra.mxu0 0.0
  %409 = vmatprep.subr.mxu0 0.0
  %410 = vmatpush1.msra.mxu0 0.0
  %411 = vmatprep.subr.mxu0 0.0
  %412 = vmatpush1.msra.mxu0 0.0
  %413 = vmatprep.subr.mxu0 0.0
  %414 = vmatpush1.msra.mxu0 0.0
  %415 = vmatprep.subr.mxu0 0.0
  %416 = vmatpush1.msra.mxu0 0.0
  %417 = vmatprep.subr.mxu0 0.0
  %418 = vmatpush1.msra.mxu0 0.0
  %419 = vmatprep.subr.mxu0 0.0
  %420 = vmatpush1.msra.mxu0 0.0
  %421 = vmatprep.subr.mxu0 0.0
  %422 = vmatpush1.msra.mxu0 0.0
  %423 = vmatprep.subr.mxu0 0.0
  %424 = vmatpush1.msra.mxu0 0.0
  %425 = vmatprep.subr.mxu0 0.0
  %426 = vmatpush1.msra.mxu0 0.0
  %427 = vmatprep.subr.mxu0 0.0
  %428 = vmatpush1.msra.mxu0 0.0
  %429 = vmatprep.subr.mxu0 0.0
  %430 = vmatpush1.msra.mxu0 0.0
  %431 = vmatprep.subr.mxu0 0.0
  %432 = vmatpush1.msra.mxu0 0.0
  %433 = vmatprep.subr.mxu0 0.0
  %434 = vmatpush1.msra.mxu0 0.0
  %435 = vmatprep.subr.mxu0 0.0
  %436 = vmatpush1.msra.mxu0 0.0
  %437 = vmatprep.subr.mxu0 0.0
  %438 = vmatpush1.msra.mxu0 0.0
  %439 = vmatprep.subr.mxu0 0.0
  %440 = vmatpush1.msra.mxu0 0.0
  %441 = vmatprep.subr.mxu0 0.0
  %442 = vmatpush1.msra.mxu0 0.0
  %443 = vmatprep.subr.mxu0 0.0
  %444 = vmatpush1.msra.mxu0 0.0
  %445 = vmatprep.subr.mxu0 0.0
  %446 = vmatpush1.msra.mxu0 0.0
  %447 = vmatprep.subr.mxu0 0.0
  %448 = vmatpush1.msra.mxu0 0.0
  %449 = vmatprep.subr.mxu0 0.0
  %450 = vmatpush1.msra.mxu0 0.0
  %451 = vmatprep.subr.mxu0 0.0
  %452 = vmatpush1.msra.mxu0 0.0
  %453 = vmatprep.subr.mxu0 0.0
  %454 = vmatpush1.msra.mxu0 0.0
  %455 = vmatprep.mubr.f32.mxu0 0.0
  %456 = vmatmul.mubr.f32.gmra.mrb[0].mxu0 %v389
  %v457 = vpop.f32.mrb[0].mxu0
  %v458 = vadd.f32 0.0, %v457
  %v459 = vpop.f32.mrb[0].mxu0
  %460 = vdwg.mxu0
  %v461 = vadd.f32 %v230, %v458
  %v462 = vtanh.pop %v461
  %v464 = vsel %vm237, %v462, 0
  %466 = vmatprep.subr.mxu0 0.0
  %467 = vmatpush1.msra.mxu0 %v210
  %468 = vmatprep.subr.mxu0 0.0
  %469 = vmatpush1.msra.mxu0 %v211
  %470 = vmatprep.subr.mxu0 0.0
  %471 = vmatpush1.msra.mxu0 %v212
  %472 = vmatprep.subr.mxu0 0.0
  %473 = vmatpush1.msra.mxu0 %v213
  %474 = vmatprep.subr.mxu0 0.0
  %475 = vmatpush1.msra.mxu0 %v214
  %476 = vmatprep.subr.mxu0 0.0
  %477 = vmatpush1.msra.mxu0 %v215
  %478 = vmatprep.subr.mxu0 0.0
  %479 = vmatpush1.msra.mxu0 %v216
  %480 = vmatprep.subr.mxu0 0.0
  %481 = vmatpush1.msra.mxu0 %v217
  %482 = vmatprep.subr.mxu0 0.0
  %483 = vmatpush1.msra.mxu0 0.0
  %484 = vmatprep.subr.mxu0 0.0
  %485 = vmatpush1.msra.mxu0 0.0
  %486 = vmatprep.subr.mxu0 0.0
  %487 = vmatpush1.msra.mxu0 0.0
  %488 = vmatprep.subr.mxu0 0.0
  %489 = vmatpush1.msra.mxu0 0.0
  %490 = vmatprep.subr.mxu0 0.0
  %491 = vmatpush1.msra.mxu0 0.0
  %492 = vmatprep.subr.mxu0 0.0
  %493 = vmatpush1.msra.mxu0 0.0
  %494 = vmatprep.subr.mxu0 0.0
  %495 = vmatpush1.msra.mxu0 0.0
  %496 = vmatprep.subr.mxu0 0.0
  %497 = vmatpush1.msra.mxu0 0.0
  %498 = vmatprep.subr.mxu0 0.0
  %499 = vmatpush1.msra.mxu0 0.0
  %500 = vmatprep.subr.mxu0 0.0
  %501 = vmatpush1.msra.mxu0 0.0
  %502 = vmatprep.subr.mxu0 0.0
  %503 = vmatpush1.msra.mxu0 0.0
  %504 = vmatprep.subr.mxu0 0.0
  %505 = vmatpush1.msra.mxu0 0.0
  %506 = vmatprep.subr.mxu0 0.0
  %507 = vmatpush1.msra.mxu0 0.0
  %508 = vmatprep.subr.mxu0 0.0
  %509 = vmatpush1.msra.mxu0 0.0
  %510 = vmatprep.subr.mxu0 0.0
  %511 = vmatpush1.msra.mxu0 0.0
  %512 = vmatprep.subr.mxu0 0.0
  %513 = vmatpush1.msra.mxu0 0.0
  %514 = vmatprep.subr.mxu0 0.0
  %515 = vmatpush1.msra.mxu0 0.0
  %516 = vmatprep.subr.mxu0 0.0
  %517 = vmatpush1.msra.mxu0 0.0
  %518 = vmatprep.subr.mxu0 0.0
  %519 = vmatpush1.msra.mxu0 0.0
  %520 = vmatprep.subr.mxu0 0.0
  %521 = vmatpush1.msra.mxu0 0.0
  %522 = vmatprep.subr.mxu0 0.0
  %523 = vmatpush1.msra.mxu0 0.0
  %524 = vmatprep.subr.mxu0 0.0
  %525 = vmatpush1.msra.mxu0 0.0
  %526 = vmatprep.subr.mxu0 0.0
  %527 = vmatpush1.msra.mxu0 0.0
  %528 = vmatprep.subr.mxu0 0.0
  %529 = vmatpush1.msra.mxu0 0.0
  %530 = vmatprep.mubr.f32.mxu0 0.0
  %531 = vmatmul.mubr.f32.gmra.mrb[0].mxu0 %v464
  %v532 = vpop.f32.mrb[0].mxu0
  %v533 = vadd.f32 0.0, %v532
  %v534 = vpop.f32.mrb[0].mxu0
  %535 = vdwg.mxu0
  %v536 = vadd.f32 %v231, %v533
  %v537 = vtanh.pop %v536
  %v539 = vsel %vm237, %v537, 0
  %541 = vmatprep.subr.mxu0 0.0
  %542 = vmatpush1.msra.mxu0 %v210
  %543 = vmatprep.subr.mxu0 0.0
  %544 = vmatpush1.msra.mxu0 %v211
  %545 = vmatprep.subr.mxu0 0.0
  %546 = vmatpush1.msra.mxu0 %v212
  %547 = vmatprep.subr.mxu0 0.0
  %548 = vmatpush1.msra.mxu0 %v213
  %549 = vmatprep.subr.mxu0 0.0
  %550 = vmatpush1.msra.mxu0 %v214
  %551 = vmatprep.subr.mxu0 0.0
  %552 = vmatpush1.msra.mxu0 %v215
  %553 = vmatprep.subr.mxu0 0.0
  %554 = vmatpush1.msra.mxu0 %v216
  %555 = vmatprep.subr.mxu0 0.0
  %556 = vmatpush1.msra.mxu0 %v217
  %557 = vmatprep.subr.mxu0 0.0
  %558 = vmatpush1.msra.mxu0 0.0
  %559 = vmatprep.subr.mxu0 0.0
  %560 = vmatpush1.msra.mxu0 0.0
  %561 = vmatprep.subr.mxu0 0.0
  %562 = vmatpush1.msra.mxu0 0.0
  %563 = vmatprep.subr.mxu0 0.0
  %564 = vmatpush1.msra.mxu0 0.0
  %565 = vmatprep.subr.mxu0 0.0
  %566 = vmatpush1.msra.mxu0 0.0
  %567 = vmatprep.subr.mxu0 0.0
  %568 = vmatpush1.msra.mxu0 0.0
  %569 = vmatprep.subr.mxu0 0.0
  %570 = vmatpush1.msra.mxu0 0.0
  %571 = vmatprep.subr.mxu0 0.0
  %572 = vmatpush1.msra.mxu0 0.0
  %573 = vmatprep.subr.mxu0 0.0
  %574 = vmatpush1.msra.mxu0 0.0
  %575 = vmatprep.subr.mxu0 0.0
  %576 = vmatpush1.msra.mxu0 0.0
  %577 = vmatprep.subr.mxu0 0.0
  %578 = vmatpush1.msra.mxu0 0.0
  %579 = vmatprep.subr.mxu0 0.0
  %580 = vmatpush1.msra.mxu0 0.0
  %581 = vmatprep.subr.mxu0 0.0
  %582 = vmatpush1.msra.mxu0 0.0
  %583 = vmatprep.subr.mxu0 0.0
  %584 = vmatpush1.msra.mxu0 0.0
  %585 = vmatprep.subr.mxu0 0.0
  %586 = vmatpush1.msra.mxu0 0.0
  %587 = vmatprep.subr.mxu0 0.0
  %588 = vmatpush1.msra.mxu0 0.0
  %589 = vmatprep.subr.mxu0 0.0
  %590 = vmatpush1.msra.mxu0 0.0
  %591 = vmatprep.subr.mxu0 0.0
  %592 = vmatpush1.msra.mxu0 0.0
  %593 = vmatprep.subr.mxu0 0.0
  %594 = vmatpush1.msra.mxu0 0.0
  %595 = vmatprep.subr.mxu0 0.0
  %596 = vmatpush1.msra.mxu0 0.0
  %597 = vmatprep.subr.mxu0 0.0
  %598 = vmatpush1.msra.mxu0 0.0
  %599 = vmatprep.subr.mxu0 0.0
  %600 = vmatpush1.msra.mxu0 0.0
  %601 = vmatprep.subr.mxu0 0.0
  %602 = vmatpush1.msra.mxu0 0.0
  %603 = vmatprep.subr.mxu0 0.0
  %604 = vmatpush1.msra.mxu0 0.0
  %605 = vmatprep.mubr.f32.mxu0 0.0
  %606 = vmatmul.mubr.f32.gmra.mrb[0].mxu0 %v539
  %v607 = vpop.f32.mrb[0].mxu0
  %v608 = vadd.f32 0.0, %v607
  %v609 = vpop.f32.mrb[0].mxu0
  %610 = vdwg.mxu0
  %v611 = vadd.f32 %v232, %v608
  %v612 = vtanh.pop %v611
  %v614 = vsel %vm237, %v612, 0
  %616 = vmatprep.subr.mxu0 0.0
  %617 = vmatpush1.msra.mxu0 %v210
  %618 = vmatprep.subr.mxu0 0.0
  %619 = vmatpush1.msra.mxu0 %v211
  %620 = vmatprep.subr.mxu0 0.0
  %621 = vmatpush1.msra.mxu0 %v212
  %622 = vmatprep.subr.mxu0 0.0
  %623 = vmatpush1.msra.mxu0 %v213
  %624 = vmatprep.subr.mxu0 0.0
  %625 = vmatpush1.msra.mxu0 %v214
  %626 = vmatprep.subr.mxu0 0.0
  %627 = vmatpush1.msra.mxu0 %v215
  %628 = vmatprep.subr.mxu0 0.0
  %629 = vmatpush1.msra.mxu0 %v216
  %630 = vmatprep.subr.mxu0 0.0
  %631 = vmatpush1.msra.mxu0 %v217
  %632 = vmatprep.subr.mxu0 0.0
  %633 = vmatpush1.msra.mxu0 0.0
  %634 = vmatprep.subr.mxu0 0.0
  %635 = vmatpush1.msra.mxu0 0.0
  %636 = vmatprep.subr.mxu0 0.0
  %637 = vmatpush1.msra.mxu0 0.0
  %638 = vmatprep.subr.mxu0 0.0
  %639 = vmatpush1.msra.mxu0 0.0
  %640 = vmatprep.subr.mxu0 0.0
  %641 = vmatpush1.msra.mxu0 0.0
  %642 = vmatprep.subr.mxu0 0.0
  %643 = vmatpush1.msra.mxu0 0.0
  %644 = vmatprep.subr.mxu0 0.0
  %645 = vmatpush1.msra.mxu0 0.0
  %646 = vmatprep.subr.mxu0 0.0
  %647 = vmatpush1.msra.mxu0 0.0
  %648 = vmatprep.subr.mxu0 0.0
  %649 = vmatpush1.msra.mxu0 0.0
  %650 = vmatprep.subr.mxu0 0.0
  %651 = vmatpush1.msra.mxu0 0.0
  %652 = vmatprep.subr.mxu0 0.0
  %653 = vmatpush1.msra.mxu0 0.0
  %654 = vmatprep.subr.mxu0 0.0
  %655 = vmatpush1.msra.mxu0 0.0
  %656 = vmatprep.subr.mxu0 0.0
  %657 = vmatpush1.msra.mxu0 0.0
  %658 = vmatprep.subr.mxu0 0.0
  %659 = vmatpush1.msra.mxu0 0.0
  %660 = vmatprep.subr.mxu0 0.0
  %661 = vmatpush1.msra.mxu0 0.0
  %662 = vmatprep.subr.mxu0 0.0
  %663 = vmatpush1.msra.mxu0 0.0
  %664 = vmatprep.subr.mxu0 0.0
  %665 = vmatpush1.msra.mxu0 0.0
  %666 = vmatprep.subr.mxu0 0.0
  %667 = vmatpush1.msra.mxu0 0.0
  %668 = vmatprep.subr.mxu0 0.0
  %669 = vmatpush1.msra.mxu0 0.0
  %670 = vmatprep.subr.mxu0 0.0
  %671 = vmatpush1.msra.mxu0 0.0
  %672 = vmatprep.subr.mxu0 0.0
  %673 = vmatpush1.msra.mxu0 0.0
  %674 = vmatprep.subr.mxu0 0.0
  %675 = vmatpush1.msra.mxu0 0.0
  %676 = vmatprep.subr.mxu0 0.0
  %677 = vmatpush1.msra.mxu0 0.0
  %678 = vmatprep.subr.mxu0 0.0
  %679 = vmatpush1.msra.mxu0 0.0
  %680 = vmatprep.mubr.f32.mxu0 0.0
  %681 = vmatmul.mubr.f32.gmra.mrb[0].mxu0 %v614
  %v682 = vpop.f32.mrb[0].mxu0
  %v683 = vadd.f32 0.0, %v682
  %v684 = vpop.f32.mrb[0].mxu0
  %685 = vdwg.mxu0
  %v686 = vadd.f32 %v233, %v683
  %v687 = vtanh.pop %v686
  %v689 = vsel %vm237, %v687, 0
  %691 = vmatprep.subr.mxu0 0.0
  %692 = vmatpush1.msra.mxu0 %v210
  %693 = vmatprep.subr.mxu0 0.0
  %694 = vmatpush1.msra.mxu0 %v211
  %695 = vmatprep.subr.mxu0 0.0
  %696 = vmatpush1.msra.mxu0 %v212
  %697 = vmatprep.subr.mxu0 0.0
  %698 = vmatpush1.msra.mxu0 %v213
  %699 = vmatprep.subr.mxu0 0.0
  %700 = vmatpush1.msra.mxu0 %v214
  %701 = vmatprep.subr.mxu0 0.0
  %702 = vmatpush1.msra.mxu0 %v215
  %703 = vmatprep.subr.mxu0 0.0
  %704 = vmatpush1.msra.mxu0 %v216
  %705 = vmatprep.subr.mxu0 0.0
  %706 = vmatpush1.msra.mxu0 %v217
  %707 = vmatprep.subr.mxu0 0.0
  %708 = vmatpush1.msra.mxu0 0.0
  %709 = vmatprep.subr.mxu0 0.0
  %710 = vmatpush1.msra.mxu0 0.0
  %711 = vmatprep.subr.mxu0 0.0
  %712 = vmatpush1.msra.mxu0 0.0
  %713 = vmatprep.subr.mxu0 0.0
  %714 = vmatpush1.msra.mxu0 0.0
  %715 = vmatprep.subr.mxu0 0.0
  %716 = vmatpush1.msra.mxu0 0.0
  %717 = vmatprep.subr.mxu0 0.0
  %718 = vmatpush1.msra.mxu0 0.0
  %719 = vmatprep.subr.mxu0 0.0
  %720 = vmatpush1.msra.mxu0 0.0
  %721 = vmatprep.subr.mxu0 0.0
  %722 = vmatpush1.msra.mxu0 0.0
  %723 = vmatprep.subr.mxu0 0.0
  %724 = vmatpush1.msra.mxu0 0.0
  %725 = vmatprep.subr.mxu0 0.0
  %726 = vmatpush1.msra.mxu0 0.0
  %727 = vmatprep.subr.mxu0 0.0
  %728 = vmatpush1.msra.mxu0 0.0
  %729 = vmatprep.subr.mxu0 0.0
  %730 = vmatpush1.msra.mxu0 0.0
  %731 = vmatprep.subr.mxu0 0.0
  %732 = vmatpush1.msra.mxu0 0.0
  %733 = vmatprep.subr.mxu0 0.0
  %734 = vmatpush1.msra.mxu0 0.0
  %735 = vmatprep.subr.mxu0 0.0
  %736 = vmatpush1.msra.mxu0 0.0
  %737 = vmatprep.subr.mxu0 0.0
  %738 = vmatpush1.msra.mxu0 0.0
  %739 = vmatprep.subr.mxu0 0.0
  %740 = vmatpush1.msra.mxu0 0.0
  %741 = vmatprep.subr.mxu0 0.0
  %742 = vmatpush1.msra.mxu0 0.0
  %743 = vmatprep.subr.mxu0 0.0
  %744 = vmatpush1.msra.mxu0 0.0
  %745 = vmatprep.subr.mxu0 0.0
  %746 = vmatpush1.msra.mxu0 0.0
  %747 = vmatprep.subr.mxu0 0.0
  %748 = vmatpush1.msra.mxu0 0.0
  %749 = vmatprep.subr.mxu0 0.0
  %750 = vmatpush1.msra.mxu0 0.0
  %751 = vmatprep.subr.mxu0 0.0
  %752 = vmatpush1.msra.mxu0 0.0
  %753 = vmatprep.subr.mxu0 0.0
  %754 = vmatpush1.msra.mxu0 0.0
  %755 = vmatprep.mubr.f32.mxu0 0.0
  %756 = vmatmul.mubr.f32.gmra.mrb[0].mxu0 %v689
  %v757 = vpop.f32.mrb[0].mxu0
  %v758 = vadd.f32 0.0, %v757
  %v759 = vpop.f32.mrb[0].mxu0
  %760 = vdwg.mxu0
  %v761 = vadd.f32 %v234, %v758
  %v762 = vtanh.pop %v761
  %v764 = vsel %vm237, %v762, 0
  %766 = vmatprep.subr.mxu0 0.0
  %767 = vmatpush1.msra.mxu0 %v210
  %768 = vmatprep.subr.mxu0 0.0
  %769 = vmatpush1.msra.mxu0 %v211
  %770 = vmatprep.subr.mxu0 0.0
  %771 = vmatpush1.msra.mxu0 %v212
  %772 = vmatprep.subr.mxu0 0.0
  %773 = vmatpush1.msra.mxu0 %v213
  %774 = vmatprep.subr.mxu0 0.0
  %775 = vmatpush1.msra.mxu0 %v214
  %776 = vmatprep.subr.mxu0 0.0
  %777 = vmatpush1.msra.mxu0 %v215
  %778 = vmatprep.subr.mxu0 0.0
  %779 = vmatpush1.msra.mxu0 %v216
  %780 = vmatprep.subr.mxu0 0.0
  %781 = vmatpush1.msra.mxu0 %v217
  %782 = vmatprep.subr.mxu0 0.0
  %783 = vmatpush1.msra.mxu0 0.0
  %784 = vmatprep.subr.mxu0 0.0
  %785 = vmatpush1.msra.mxu0 0.0
  %786 = vmatprep.subr.mxu0 0.0
  %787 = vmatpush1.msra.mxu0 0.0
  %788 = vmatprep.subr.mxu0 0.0
  %789 = vmatpush1.msra.mxu0 0.0
  %790 = vmatprep.subr.mxu0 0.0
  %791 = vmatpush1.msra.mxu0 0.0
  %792 = vmatprep.subr.mxu0 0.0
  %793 = vmatpush1.msra.mxu0 0.0
  %794 = vmatprep.subr.mxu0 0.0
  %795 = vmatpush1.msra.mxu0 0.0
  %796 = vmatprep.subr.mxu0 0.0
  %797 = vmatpush1.msra.mxu0 0.0
  %798 = vmatprep.subr.mxu0 0.0
  %799 = vmatpush1.msra.mxu0 0.0
  %800 = vmatprep.subr.mxu0 0.0
  %801 = vmatpush1.msra.mxu0 0.0
  %802 = vmatprep.subr.mxu0 0.0
  %803 = vmatpush1.msra.mxu0 0.0
  %804 = vmatprep.subr.mxu0 0.0
  %805 = vmatpush1.msra.mxu0 0.0
  %806 = vmatprep.subr.mxu0 0.0
  %807 = vmatpush1.msra.mxu0 0.0
  %808 = vmatprep.subr.mxu0 0.0
  %809 = vmatpush1.msra.mxu0 0.0
  %810 = vmatprep.subr.mxu0 0.0
  %811 = vmatpush1.msra.mxu0 0.0
  %812 = vmatprep.subr.mxu0 0.0
  %813 = vmatpush1.msra.mxu0 0.0
  %814 = vmatprep.subr.mxu0 0.0
  %815 = vmatpush1.msra.mxu0 0.0
  %816 = vmatprep.subr.mxu0 0.0
  %817 = vmatpush1.msra.mxu0 0.0
  %818 = vmatprep.subr.mxu0 0.0
  %819 = vmatpush1.msra.mxu0 0.0
  %820 = vmatprep.subr.mxu0 0.0
  %821 = vmatpush1.msra.mxu0 0.0
  %822 = vmatprep.subr.mxu0 0.0
  %823 = vmatpush1.msra.mxu0 0.0
  %824 = vmatprep.subr.mxu0 0.0
  %825 = vmatpush1.msra.mxu0 0.0
  %826 = vmatprep.subr.mxu0 0.0
  %827 = vmatpush1.msra.mxu0 0.0
  %828 = vmatprep.subr.mxu0 0.0
  %829 = vmatpush1.msra.mxu0 0.0
  %830 = vmatprep.mubr.f32.mxu0 0.0
  %831 = vmatmul.mubr.f32.gmra.mrb[0].mxu0 %v764
  %v832 = vpop.f32.mrb[0].mxu0
  %v833 = vadd.f32 0.0, %v832
  %v834 = vpop.f32.mrb[0].mxu0
  %835 = vdwg.mxu0
  %v836 = vadd.f32 %v235, %v833
  %v837 = vtanh.pop %v836
  %v839 = vsel %vm237, %v837, 0
  %841 = vmatprep.subr.mxu0 0.0
  %842 = vmatpush1.msra.mxu0 %v210
  %843 = vmatprep.subr.mxu0 0.0
  %844 = vmatpush1.msra.mxu0 %v211
  %845 = vmatprep.subr.mxu0 0.0
  %846 = vmatpush1.msra.mxu0 %v212
  %847 = vmatprep.subr.mxu0 0.0
  %848 = vmatpush1.msra.mxu0 %v213
  %849 = vmatprep.subr.mxu0 0.0
  %850 = vmatpush1.msra.mxu0 %v214
  %851 = vmatprep.subr.mxu0 0.0
  %852 = vmatpush1.msra.mxu0 %v215
  %853 = vmatprep.subr.mxu0 0.0
  %854 = vmatpush1.msra.mxu0 %v216
  %855 = vmatprep.subr.mxu0 0.0
  %856 = vmatpush1.msra.mxu0 %v217
  %857 = vmatprep.subr.mxu0 0.0
  %858 = vmatpush1.msra.mxu0 0.0
  %859 = vmatprep.subr.mxu0 0.0
  %860 = vmatpush1.msra.mxu0 0.0
  %861 = vmatprep.subr.mxu0 0.0
  %862 = vmatpush1.msra.mxu0 0.0
  %863 = vmatprep.subr.mxu0 0.0
  %864 = vmatpush1.msra.mxu0 0.0
  %865 = vmatprep.subr.mxu0 0.0
  %866 = vmatpush1.msra.mxu0 0.0
  %867 = vmatprep.subr.mxu0 0.0
  %868 = vmatpush1.msra.mxu0 0.0
  %869 = vmatprep.subr.mxu0 0.0
  %870 = vmatpush1.msra.mxu0 0.0
  %871 = vmatprep.subr.mxu0 0.0
  %872 = vmatpush1.msra.mxu0 0.0
  %873 = vmatprep.subr.mxu0 0.0
  %874 = vmatpush1.msra.mxu0 0.0
  %875 = vmatprep.subr.mxu0 0.0
  %876 = vmatpush1.msra.mxu0 0.0
  %877 = vmatprep.subr.mxu0 0.0
  %878 = vmatpush1.msra.mxu0 0.0
  %879 = vmatprep.subr.mxu0 0.0
  %880 = vmatpush1.msra.mxu0 0.0
  %881 = vmatprep.subr.mxu0 0.0
  %882 = vmatpush1.msra.mxu0 0.0
  %883 = vmatprep.subr.mxu0 0.0
  %884 = vmatpush1.msra.mxu0 0.0
  %885 = vmatprep.subr.mxu0 0.0
  %886 = vmatpush1.msra.mxu0 0.0
  %887 = vmatprep.subr.mxu0 0.0
  %888 = vmatpush1.msra.mxu0 0.0
  %889 = vmatprep.subr.mxu0 0.0
  %890 = vmatpush1.msra.mxu0 0.0
  %891 = vmatprep.subr.mxu0 0.0
  %892 = vmatpush1.msra.mxu0 0.0
  %893 = vmatprep.subr.mxu0 0.0
  %894 = vmatpush1.msra.mxu0 0.0
  %895 = vmatprep.subr.mxu0 0.0
  %896 = vmatpush1.msra.mxu0 0.0
  %897 = vmatprep.subr.mxu0 0.0
  %898 = vmatpush1.msra.mxu0 0.0
  %899 = vmatprep.subr.mxu0 0.0
  %900 = vmatpush1.msra.mxu0 0.0
  %901 = vmatprep.subr.mxu0 0.0
  %902 = vmatpush1.msra.mxu0 0.0
  %903 = vmatprep.subr.mxu0 0.0
  %904 = vmatpush1.msra.mxu0 0.0
  %905 = vmatprep.mubr.f32.mxu0 0.0
  %906 = vmatmul.mubr.f32.gmra.mrb[0].mxu0 %v839
  %v907 = vpop.f32.mrb[0].mxu0
  %v908 = vadd.f32 0.0, %v907
  %v909 = vpop.f32.mrb[0].mxu0
  %910 = vdwg.mxu0
  %v911 = vadd.f32 %v236, %v908
  %v912 = vtanh.pop %v911
  %v913 = vld [vmem:[%s4] sm:$0xff]
  %v914 = vld [vmem:[%s4 + $0x8] sm:$0xff]
  %v915 = vld [vmem:[%s4 + $0x10] sm:$0xff]
  %v916 = vld [vmem:[%s4 + $0x18] sm:$0xff]
  %v917 = vld [vmem:[%s5] sm:$0x1]
  %v919 = vlaneseq
  %v920 = vshrl.u32 %v919, 7
  %v921 = vsub.s32 0, %v920
  %v922 = vrot.slane %v917, %v921
  %925 = vrot.lane.b32.xlu0 %v387, 96
  %v926 = vpop.permute.xlu0 %925
  %927 = vrot.lane.b32.xlu0 %v462, 96
  %v928 = vpop.permute.xlu0 %927
  %929 = vrot.lane.b32.xlu0 %v537, 96
  %v930 = vpop.permute.xlu0 %929
  %931 = vrot.lane.b32.xlu0 %v612, 96
  %v932 = vpop.permute.xlu0 %931
  %933 = vrot.lane.b32.xlu0 %v687, 96
  %v934 = vpop.permute.xlu0 %933
  %935 = vrot.lane.b32.xlu0 %v762, 96
  %v936 = vpop.permute.xlu0 %935
  %937 = vrot.lane.b32.xlu0 %v837, 96
  %v938 = vpop.permute.xlu0 %937
  %939 = vrot.lane.b32.xlu0 %v912, 96
  %v940 = vpop.permute.xlu0 %939
  %v941 = vsel %vm224, %v926, 0
  %v943 = vsel %vm224, %v928, 0
  %v945 = vsel %vm224, %v930, 0
  %v947 = vsel %vm224, %v932, 0
  %v949 = vsel %vm224, %v934, 0
  %v951 = vsel %vm224, %v936, 0
  %v953 = vsel %vm224, %v938, 0
  %v955 = vsel %vm224, %v940, 0
  %957 = vmatprep.subr.mxu0 0.0
  %958 = vmatpush1.msra.mxu0 %v913
  %959 = vmatprep.subr.mxu0 0.0
  %960 = vmatpush1.msra.mxu0 %v914
  %961 = vmatprep.subr.mxu0 0.0
  %962 = vmatpush1.msra.mxu0 %v915
  %963 = vmatprep.subr.mxu0 0.0
  %964 = vmatpush1.msra.mxu0 %v916
  %965 = vmatprep.subr.mxu0 0.0
  %966 = vmatpush1.msra.mxu0 0.0
  %967 = vmatprep.subr.mxu0 0.0
  %968 = vmatpush1.msra.mxu0 0.0
  %969 = vmatprep.subr.mxu0 0.0
  %970 = vmatpush1.msra.mxu0 0.0
  %971 = vmatprep.subr.mxu0 0.0
  %972 = vmatpush1.msra.mxu0 0.0
  %973 = vmatprep.subr.mxu0 0.0
  %974 = vmatpush1.msra.mxu0 0.0
  %975 = vmatprep.subr.mxu0 0.0
  %976 = vmatpush1.msra.mxu0 0.0
  %977 = vmatprep.subr.mxu0 0.0
  %978 = vmatpush1.msra.mxu0 0.0
  %979 = vmatprep.subr.mxu0 0.0
  %980 = vmatpush1.msra.mxu0 0.0
  %981 = vmatprep.subr.mxu0 0.0
  %982 = vmatpush1.msra.mxu0 0.0
  %983 = vmatprep.subr.mxu0 0.0
  %984 = vmatpush1.msra.mxu0 0.0
  %985 = vmatprep.subr.mxu0 0.0
  %986 = vmatpush1.msra.mxu0 0.0
  %987 = vmatprep.subr.mxu0 0.0
  %988 = vmatpush1.msra.mxu0 0.0
  %989 = vmatprep.subr.mxu0 0.0
  %990 = vmatpush1.msra.mxu0 0.0
  %991 = vmatprep.subr.mxu0 0.0
  %992 = vmatpush1.msra.mxu0 0.0
  %993 = vmatprep.subr.mxu0 0.0
  %994 = vmatpush1.msra.mxu0 0.0
  %995 = vmatprep.subr.mxu0 0.0
  %996 = vmatpush1.msra.mxu0 0.0
  %997 = vmatprep.subr.mxu0 0.0
  %998 = vmatpush1.msra.mxu0 0.0
  %999 = vmatprep.subr.mxu0 0.0
  %1000 = vmatpush1.msra.mxu0 0.0
  %1001 = vmatprep.subr.mxu0 0.0
  %1002 = vmatpush1.msra.mxu0 0.0
  %1003 = vmatprep.subr.mxu0 0.0
  %1004 = vmatpush1.msra.mxu0 0.0
  %1005 = vmatprep.subr.mxu0 0.0
  %1006 = vmatpush1.msra.mxu0 0.0
  %1007 = vmatprep.subr.mxu0 0.0
  %1008 = vmatpush1.msra.mxu0 0.0
  %1009 = vmatprep.subr.mxu0 0.0
  %1010 = vmatpush1.msra.mxu0 0.0
  %1011 = vmatprep.subr.mxu0 0.0
  %1012 = vmatpush1.msra.mxu0 0.0
  %1013 = vmatprep.subr.mxu0 0.0
  %1014 = vmatpush1.msra.mxu0 0.0
  %1015 = vmatprep.subr.mxu0 0.0
  %1016 = vmatpush1.msra.mxu0 0.0
  %1017 = vmatprep.subr.mxu0 0.0
  %1018 = vmatpush1.msra.mxu0 0.0
  %1019 = vmatprep.subr.mxu0 0.0
  %1020 = vmatpush1.msra.mxu0 0.0
  %1021 = vmatprep.mubr.f32.mxu0 0.0
  %1022 = vmatmul.mubr.f32.gmra.mrb[0].mxu0 %v941
  %v1023 = vpop.f32.mrb[0].mxu0
  %v1024 = vadd.f32 %v922, %v1023
  %v1025 = vpop.f32.mrb[0].mxu0
  %1026 = vmatprep.mubr.f32.mxu0 0.0
  %1027 = vmatmul.mubr.f32.gmra.mrb[0].mxu0 %v943
  %v1028 = vpop.f32.mrb[0].mxu0
  %v1029 = vadd.f32 %v922, %v1028
  %v1030 = vpop.f32.mrb[0].mxu0
  %1031 = vmatprep.mubr.f32.mxu0 0.0
  %1032 = vmatmul.mubr.f32.gmra.mrb[0].mxu0 %v945
  %v1033 = vpop.f32.mrb[0].mxu0
  %v1034 = vadd.f32 %v922, %v1033
  %v1035 = vpop.f32.mrb[0].mxu0
  %1036 = vmatprep.mubr.f32.mxu0 0.0
  %1037 = vmatmul.mubr.f32.gmra.mrb[0].mxu0 %v947
  %v1038 = vpop.f32.mrb[0].mxu0
  %v1039 = vadd.f32 %v922, %v1038
  %v1040 = vpop.f32.mrb[0].mxu0
  %1041 = vmatprep.mubr.f32.mxu0 0.0
  %1042 = vmatmul.mubr.f32.gmra.mrb[0].mxu0 %v949
  %v1043 = vpop.f32.mrb[0].mxu0
  %v1044 = vadd.f32 %v922, %v1043
  %v1045 = vpop.f32.mrb[0].mxu0
  %1046 = vmatprep.mubr.f32.mxu0 0.0
  %1047 = vmatmul.mubr.f32.gmra.mrb[0].mxu0 %v951
  %v1048 = vpop.f32.mrb[0].mxu0
  %v1049 = vadd.f32 %v922, %v1048
  %v1050 = vpop.f32.mrb[0].mxu0
  %1051 = vmatprep.mubr.f32.mxu0 0.0
  %1052 = vmatmul.mubr.f32.gmra.mrb[0].mxu0 %v953
  %v1053 = vpop.f32.mrb[0].mxu0
  %v1054 = vadd.f32 %v922, %v1053
  %v1055 = vpop.f32.mrb[0].mxu0
  %1056 = vmatprep.mubr.f32.mxu0 0.0
  %1057 = vmatmul.mubr.f32.gmra.mrb[0].mxu0 %v955
  %v1058 = vpop.f32.mrb[0].mxu0
  %v1059 = vadd.f32 %v922, %v1058
  %v1060 = vpop.f32.mrb[0].mxu0
  %1061 = vdwg.mxu0
  %vm1062 = vcmask 130048
  %1063 = vst.msk [vmem:[%s6] sm:$0xff] %vm1062, %v1024
  %1064 = vst.msk [vmem:[%s6 + $0x8] sm:$0xff] %vm1062, %v1029
  %1065 = vst.msk [vmem:[%s6 + $0x10] sm:$0xff] %vm1062, %v1034
  %1066 = vst.msk [vmem:[%s6 + $0x18] sm:$0xff] %vm1062, %v1039
  %1067 = vst.msk [vmem:[%s6 + $0x20] sm:$0xff] %vm1062, %v1044
  %1068 = vst.msk [vmem:[%s6 + $0x28] sm:$0xff] %vm1062, %v1049
  %1069 = vst.msk [vmem:[%s6 + $0x30] sm:$0xff] %vm1062, %v1054
  %1070 = vst.msk [vmem:[%s6 + $0x38] sm:$0xff] %vm1062, %v1059
  // Predicated region
  $region26: #{tpu_custom_call.1} parent=0 // pred_check
    _
  $region27: #{tpu_custom_call.1} parent=0 // pred_check_branch
    %1072 = sbr.rel (0) target = $region29
  $region28: #{tpu_custom_call.1} parent=0 // pred_region
    _
  $region29: #{tpu_custom_call.1} parent=0 // pred_fallthru
    _
  // Predicated region
  $region30: #{tpu_custom_call.1} parent=0 // pred_check
    _
  $region31: #{tpu_custom_call.1} parent=0 // pred_check_branch
    %1074 = sbr.rel (0) target = $region33
  $region32: #{tpu_custom_call.1} parent=0 // pred_region
    _
  $region33: #{tpu_custom_call.1} parent=0 // pred_fallthru
    _

</llo_original>
